<compile_context>
chip_gen: v5e
topology: v5e:2x2
jax: 0.10.0
libtpu: 0.0.40
codegen_flags: <defaults>
</compile_context>

<pallas_src>
import functools

import jax
import jax.numpy as jnp
from jax.experimental import pallas as pl
from jax.experimental.pallas import tpu as pltpu  # noqa: F401  (kept for future flash rewrite)


def _round_up(n, m):
    return ((n + m - 1) // m) * m


def _mha_kernel(x_ref, wqkv_ref, wo_ref, bo_ref, o_ref, *, n_head, head_dim):
    f32 = jnp.float32
    d_out = n_head * head_dim

    x = x_ref[...]                                           # (T_p, d_in) f32

    # Fused QKV projection for ALL heads: one MXU matmul.
    # 1/sqrt(head_dim) is already folded into the Wq columns at pack time.
    qkv = jnp.dot(x, wqkv_ref[...], preferred_element_type=f32)   # (T_p, 3*d_out)
    q_all = qkv[:, 0 * d_out:1 * d_out]
    k_all = qkv[:, 1 * d_out:2 * d_out]
    v_all = qkv[:, 2 * d_out:3 * d_out]

    T_p = x.shape[0]
    row = jax.lax.broadcasted_iota(jnp.int32, (T_p, T_p), 0)
    col = jax.lax.broadcasted_iota(jnp.int32, (T_p, T_p), 1)
    causal = col > row   # also masks any zero-padded key rows (col >= T > row)

    # Per-head attention; n_head is a small Python int -> fully unrolled.
    ctx_parts = []
    for h in range(n_head):
        lo, hi = h * head_dim, (h + 1) * head_dim
        q = q_all[:, lo:hi]                                   # (T_p, hd)
        k = k_all[:, lo:hi]
        v = v_all[:, lo:hi]

        # Scores: contract last dims directly (no explicit transpose of K).
        s = jax.lax.dot_general(q, k, (((1,), (1,)), ((), ())),
                                preferred_element_type=f32)   # (T_p, T_p)
        s = jnp.where(causal, -1e30, s)

        # Numerically-stable softmax; reciprocal on the EUP (approx), mul on VPU.
        m = jnp.max(s, axis=-1, keepdims=True)
        p = jnp.exp(s - m)
        denom = jnp.sum(p, axis=-1, keepdims=True)
        p = p * pl.reciprocal(denom, approx=True)

        ctx_parts.append(jnp.dot(p, v, preferred_element_type=f32))  # (T_p, hd)

    # Assemble all heads into one tile and do a single output projection.
    ctx_all = jnp.concatenate(ctx_parts, axis=1)              # (T_p, d_out)
    out = jnp.dot(ctx_all, wo_ref[...], preferred_element_type=f32) + bo_ref[...]
    o_ref[...] = out.astype(o_ref.dtype)


def pack_mha_params(wq, wk, wv, wo, bo, *, n_head):
    """One-time weight packing (hoisted out of the per-call path).

    Weights are kept unpadded; the softmax scale 1/sqrt(head_dim) is folded
    into the Wq columns so the kernel does no per-call scaling.
    """
    d_in, d_out = wq.shape
    assert d_out % n_head == 0
    head_dim = d_out // n_head
    f32 = jnp.float32
    scale = 1.0 / (head_dim ** 0.5)

    wqkv = jnp.concatenate(
        [wq.astype(f32) * scale, wk.astype(f32), wv.astype(f32)], axis=1)  # (d_in, 3*d_out)

    return {
        "wqkv": wqkv,
        "wo": wo.astype(f32),                       # (d_out, d_out)
        "bo": bo.reshape(1, d_out).astype(f32),     # (1, d_out)
        "n_head": n_head,
        "head_dim": head_dim,
        "d_out": d_out,
    }


def mha_forward(x, packed):
    """Per-call forward; only pads the T axis (if T % 8 != 0)."""
    T, d_in = x.shape
    d_out = packed["d_out"]
    T_p = _round_up(T, 8)

    x_f = x.astype(jnp.float32)
    if T_p != T:
        x_f = jnp.zeros((T_p, d_in), jnp.float32).at[:T].set(x_f)

    kernel = functools.partial(
        _mha_kernel, n_head=packed["n_head"], head_dim=packed["head_dim"])

    # No grid: the whole (tiny) problem is one kernel step, all operands are
    # full-array VMEM blocks by default -> no per-step pipeline overhead.
    out = pl.pallas_call(
        kernel,
        out_shape=jax.ShapeDtypeStruct((T_p, d_out), jnp.float32),
    )(x_f, packed["wqkv"], packed["wo"], packed["bo"])

    return out[:T] if T_p != T else out


def multi_head_attention_no_batch(x, wq, wk, wv, wo, bo, *, n_head):
    """Convenience wrapper (pack + run); prefer pack_mha_params once + mha_forward."""
    return mha_forward(x, pack_mha_params(wq, wk, wv, wo, bo, n_head=n_head))


def reference_jax(x, wq, wk, wv, wo, bo, *, n_head):
    """Pure-JAX mirror of the torch forward (eval mode) for a sanity check."""
    T, _ = x.shape
    d_out = wq.shape[1]
    head_dim = d_out // n_head
    q = (x @ wq).reshape(T, n_head, head_dim).transpose(1, 0, 2)
    k = (x @ wk).reshape(T, n_head, head_dim).transpose(1, 0, 2)
    v = (x @ wv).reshape(T, n_head, head_dim).transpose(1, 0, 2)
    omega = jnp.einsum('htd,hsd->hts', q, k)
    mask = jnp.triu(jnp.ones((T, T), bool), k=1)
    omega = jnp.where(mask[None], -jnp.inf, omega)
    att = jax.nn.softmax(omega / head_dim ** 0.5, axis=-1)
    ctx = jnp.einsum('hts,hsd->htd', att, v).transpose(1, 0, 2).reshape(T, d_out)
    return ctx @ wo + bo.reshape(-1)


if __name__ == "__main__":
    # Small shapes consistent with the module: sequence length T, d_in input
    # features, d_out divisible by n_head=3; qkv_bias=False, dropout in eval.
    T, d_in, d_out, n_head = 8, 16, 24, 3

    key = jax.random.PRNGKey(0)
    kx, kq, kk, kv, ko, kb = jax.random.split(key, 6)

    x = jax.random.normal(kx, (T, d_in), dtype=jnp.float32)
    # Weights stored as (in, out): x @ W  ==  torch's x @ W.T with W (out, in).
    w_q = jax.random.normal(kq, (d_in, d_out), dtype=jnp.float32) * 0.1
    w_k = jax.random.normal(kk, (d_in, d_out), dtype=jnp.float32) * 0.1
    w_v = jax.random.normal(kv, (d_in, d_out), dtype=jnp.float32) * 0.1
    w_o = jax.random.normal(ko, (d_out, d_out), dtype=jnp.float32) * 0.1
    b_o = jax.random.normal(kb, (d_out,), dtype=jnp.float32) * 0.1

    # Pack the weights once (hoisted off the per-call path), then run.
    packed = pack_mha_params(w_q, w_k, w_v, w_o, b_o, n_head=n_head)
    out = mha_forward(x, packed)
    out = jax.block_until_ready(out)

    ref = reference_jax(x, w_q, w_k, w_v, w_o, b_o, n_head=n_head)
    assert out.shape == (T, d_out)
    # Tolerance accounts for the approx (EUP) reciprocal in the softmax denom.
    assert jnp.allclose(out, ref, atol=2e-3, rtol=2e-3), "mismatch vs reference"

    print("KERNEL_OK")
</pallas_src>

<mosaic_0001>
module attributes {stable_mosaic.version = 11 : i64} {
  func.func @_mha_kernel(%arg0: memref<8x16xf32, #tpu.memory_space<vmem>>, %arg1: memref<16x72xf32, #tpu.memory_space<vmem>>, %arg2: memref<24x24xf32, #tpu.memory_space<vmem>>, %arg3: memref<1x24xf32, #tpu.memory_space<vmem>>, %arg4: memref<8x24xf32, #tpu.memory_space<vmem>>) attributes {dimension_semantics = [], scalar_prefetch = 0 : i64, scratch_operands = 0 : i64, tpu.core_type = #tpu.core_type<tc>} {
    %c0 = arith.constant 0 : index
    %c0_0 = arith.constant 0 : index
    %0 = vector.load %arg0[%c0, %c0_0] : memref<8x16xf32, #tpu.memory_space<vmem>>, vector<8x16xf32>
    %c0_1 = arith.constant 0 : index
    %c0_2 = arith.constant 0 : index
    %1 = vector.load %arg1[%c0_1, %c0_2] : memref<16x72xf32, #tpu.memory_space<vmem>>, vector<16x72xf32>
    %cst = arith.constant dense<0.000000e+00> : vector<8x72xf32>
    %2 = tpu.matmul %0, %1, %cst {dimension_numbers = #tpu.dot_dimension_numbers<[1], [0], [0], [1], [0, 0, 1, 1], [], []>} : vector<8x16xf32>, vector<16x72xf32>, vector<8x72xf32> -> vector<8x72xf32>
    %3 = vector.extract_strided_slice %2 {offsets = [0, 0], sizes = [8, 24], strides = [1, 1]} : vector<8x72xf32> to vector<8x24xf32>
    %4 = vector.extract_strided_slice %2 {offsets = [0, 24], sizes = [8, 24], strides = [1, 1]} : vector<8x72xf32> to vector<8x24xf32>
    %5 = vector.extract_strided_slice %2 {offsets = [0, 48], sizes = [8, 24], strides = [1, 1]} : vector<8x72xf32> to vector<8x24xf32>
    %6 = tpu.iota {dimensions = array<i32: 0>} : vector<8x8xi32>
    %7 = tpu.iota {dimensions = array<i32: 1>} : vector<8x8xi32>
    %8 = arith.cmpi sgt, %7, %6 : vector<8x8xi32>
    %9 = vector.extract_strided_slice %3 {offsets = [0, 0], sizes = [8, 8], strides = [1, 1]} : vector<8x24xf32> to vector<8x8xf32>
    %10 = vector.extract_strided_slice %4 {offsets = [0, 0], sizes = [8, 8], strides = [1, 1]} : vector<8x24xf32> to vector<8x8xf32>
    %11 = vector.extract_strided_slice %5 {offsets = [0, 0], sizes = [8, 8], strides = [1, 1]} : vector<8x24xf32> to vector<8x8xf32>
    %cst_3 = arith.constant dense<0.000000e+00> : vector<8x8xf32>
    %12 = tpu.matmul %9, %10, %cst_3 {dimension_numbers = #tpu.dot_dimension_numbers<[1], [1], [0], [0], [0, 0, 1, 0], [], []>} : vector<8x8xf32>, vector<8x8xf32>, vector<8x8xf32> -> vector<8x8xf32>
    %cst_4 = arith.constant -1.000000e+30 : f32
    %13 = vector.broadcast %cst_4 : f32 to vector<8x8xf32>
    %14 = arith.select %8, %13, %12 : vector<8x8xi1>, vector<8x8xf32>
    %cst_5 = arith.constant dense<0xFF800000> : vector<8xf32>
    %15 = vector.multi_reduction <maximumf>, %14, %cst_5 [1] : vector<8x8xf32> to vector<8xf32>
    %16 = vector.shape_cast %15 : vector<8xf32> to vector<8x1xf32>
    %17 = vector.broadcast %16 : vector<8x1xf32> to vector<8x8xf32>
    %18 = arith.subf %14, %17 : vector<8x8xf32>
    %19 = math.exp %18 : vector<8x8xf32>
    %cst_6 = arith.constant dense<0.000000e+00> : vector<8xf32>
    %20 = vector.multi_reduction <add>, %19, %cst_6 [1] : vector<8x8xf32> to vector<8xf32>
    %21 = vector.shape_cast %20 : vector<8xf32> to vector<8x1xf32>
    %22 = tpu.reciprocal %21 {approx = true} : vector<8x1xf32> -> vector<8x1xf32>
    %23 = vector.broadcast %22 : vector<8x1xf32> to vector<8x8xf32>
    %24 = arith.mulf %19, %23 : vector<8x8xf32>
    %cst_7 = arith.constant dense<0.000000e+00> : vector<8x8xf32>
    %25 = tpu.matmul %24, %11, %cst_7 {dimension_numbers = #tpu.dot_dimension_numbers<[1], [0], [0], [1], [0, 0, 1, 1], [], []>} : vector<8x8xf32>, vector<8x8xf32>, vector<8x8xf32> -> vector<8x8xf32>
    %26 = vector.extract_strided_slice %3 {offsets = [0, 8], sizes = [8, 8], strides = [1, 1]} : vector<8x24xf32> to vector<8x8xf32>
    %27 = vector.extract_strided_slice %4 {offsets = [0, 8], sizes = [8, 8], strides = [1, 1]} : vector<8x24xf32> to vector<8x8xf32>
    %28 = vector.extract_strided_slice %5 {offsets = [0, 8], sizes = [8, 8], strides = [1, 1]} : vector<8x24xf32> to vector<8x8xf32>
    %cst_8 = arith.constant dense<0.000000e+00> : vector<8x8xf32>
    %29 = tpu.matmul %26, %27, %cst_8 {dimension_numbers = #tpu.dot_dimension_numbers<[1], [1], [0], [0], [0, 0, 1, 0], [], []>} : vector<8x8xf32>, vector<8x8xf32>, vector<8x8xf32> -> vector<8x8xf32>
    %cst_9 = arith.constant -1.000000e+30 : f32
    %30 = vector.broadcast %cst_9 : f32 to vector<8x8xf32>
    %31 = arith.select %8, %30, %29 : vector<8x8xi1>, vector<8x8xf32>
    %cst_10 = arith.constant dense<0xFF800000> : vector<8xf32>
    %32 = vector.multi_reduction <maximumf>, %31, %cst_10 [1] : vector<8x8xf32> to vector<8xf32>
    %33 = vector.shape_cast %32 : vector<8xf32> to vector<8x1xf32>
    %34 = vector.broadcast %33 : vector<8x1xf32> to vector<8x8xf32>
    %35 = arith.subf %31, %34 : vector<8x8xf32>
    %36 = math.exp %35 : vector<8x8xf32>
    %cst_11 = arith.constant dense<0.000000e+00> : vector<8xf32>
    %37 = vector.multi_reduction <add>, %36, %cst_11 [1] : vector<8x8xf32> to vector<8xf32>
    %38 = vector.shape_cast %37 : vector<8xf32> to vector<8x1xf32>
    %39 = tpu.reciprocal %38 {approx = true} : vector<8x1xf32> -> vector<8x1xf32>
    %40 = vector.broadcast %39 : vector<8x1xf32> to vector<8x8xf32>
    %41 = arith.mulf %36, %40 : vector<8x8xf32>
    %cst_12 = arith.constant dense<0.000000e+00> : vector<8x8xf32>
    %42 = tpu.matmul %41, %28, %cst_12 {dimension_numbers = #tpu.dot_dimension_numbers<[1], [0], [0], [1], [0, 0, 1, 1], [], []>} : vector<8x8xf32>, vector<8x8xf32>, vector<8x8xf32> -> vector<8x8xf32>
    %43 = vector.extract_strided_slice %3 {offsets = [0, 16], sizes = [8, 8], strides = [1, 1]} : vector<8x24xf32> to vector<8x8xf32>
    %44 = vector.extract_strided_slice %4 {offsets = [0, 16], sizes = [8, 8], strides = [1, 1]} : vector<8x24xf32> to vector<8x8xf32>
    %45 = vector.extract_strided_slice %5 {offsets = [0, 16], sizes = [8, 8], strides = [1, 1]} : vector<8x24xf32> to vector<8x8xf32>
    %cst_13 = arith.constant dense<0.000000e+00> : vector<8x8xf32>
    %46 = tpu.matmul %43, %44, %cst_13 {dimension_numbers = #tpu.dot_dimension_numbers<[1], [1], [0], [0], [0, 0, 1, 0], [], []>} : vector<8x8xf32>, vector<8x8xf32>, vector<8x8xf32> -> vector<8x8xf32>
    %cst_14 = arith.constant -1.000000e+30 : f32
    %47 = vector.broadcast %cst_14 : f32 to vector<8x8xf32>
    %48 = arith.select %8, %47, %46 : vector<8x8xi1>, vector<8x8xf32>
    %cst_15 = arith.constant dense<0xFF800000> : vector<8xf32>
    %49 = vector.multi_reduction <maximumf>, %48, %cst_15 [1] : vector<8x8xf32> to vector<8xf32>
    %50 = vector.shape_cast %49 : vector<8xf32> to vector<8x1xf32>
    %51 = vector.broadcast %50 : vector<8x1xf32> to vector<8x8xf32>
    %52 = arith.subf %48, %51 : vector<8x8xf32>
    %53 = math.exp %52 : vector<8x8xf32>
    %cst_16 = arith.constant dense<0.000000e+00> : vector<8xf32>
    %54 = vector.multi_reduction <add>, %53, %cst_16 [1] : vector<8x8xf32> to vector<8xf32>
    %55 = vector.shape_cast %54 : vector<8xf32> to vector<8x1xf32>
    %56 = tpu.reciprocal %55 {approx = true} : vector<8x1xf32> -> vector<8x1xf32>
    %57 = vector.broadcast %56 : vector<8x1xf32> to vector<8x8xf32>
    %58 = arith.mulf %53, %57 : vector<8x8xf32>
    %cst_17 = arith.constant dense<0.000000e+00> : vector<8x8xf32>
    %59 = tpu.matmul %58, %45, %cst_17 {dimension_numbers = #tpu.dot_dimension_numbers<[1], [0], [0], [1], [0, 0, 1, 1], [], []>} : vector<8x8xf32>, vector<8x8xf32>, vector<8x8xf32> -> vector<8x8xf32>
    %60 = tpu.concatenate %25, %42, %59 in 1 : vector<8x8xf32>, vector<8x8xf32>, vector<8x8xf32> -> vector<8x24xf32>
    %c0_18 = arith.constant 0 : index
    %c0_19 = arith.constant 0 : index
    %61 = vector.load %arg2[%c0_18, %c0_19] : memref<24x24xf32, #tpu.memory_space<vmem>>, vector<24x24xf32>
    %cst_20 = arith.constant dense<0.000000e+00> : vector<8x24xf32>
    %62 = tpu.matmul %60, %61, %cst_20 {dimension_numbers = #tpu.dot_dimension_numbers<[1], [0], [0], [1], [0, 0, 1, 1], [], []>} : vector<8x24xf32>, vector<24x24xf32>, vector<8x24xf32> -> vector<8x24xf32>
    %c0_21 = arith.constant 0 : index
    %c0_22 = arith.constant 0 : index
    %63 = vector.load %arg3[%c0_21, %c0_22] : memref<1x24xf32, #tpu.memory_space<vmem>>, vector<1x24xf32>
    %64 = vector.broadcast %63 : vector<1x24xf32> to vector<8x24xf32>
    %65 = arith.addf %62, %64 : vector<8x24xf32>
    %c0_23 = arith.constant 0 : index
    %c0_24 = arith.constant 0 : index
    %66 = vector.load %arg4[%c0_23, %c0_24] : memref<8x24xf32, #tpu.memory_space<vmem>>, vector<8x24xf32>
    tpu.vector_store %arg4[%c0_23, %c0_24], %65 {strides = array<i32>} : memref<8x24xf32, #tpu.memory_space<vmem>>, vector<8x24xf32>,
    return
  }
}

</mosaic_0001>

<llo_original>
// kernel: tpu_custom_call.1
$region0: #{tpu_custom_call.1}
  #allocation0 [shape = 'u32[]', space=smem, size = 0x4, offset = 0x4, fixed_abs, tag = 'smem constant byte address 0x4 - core index']
  #allocation1 [shape = 'u32[72,128]{1,0:T(1,128)}', space=vmem, size = 0x9000, scoped, tag = 'internal scratch']
  %s0 = inlined_call_operand.hbm [shape: f32[8,16], index: 0, kind: input, shape index: {}]
  %s1 = inlined_call_operand.hbm [shape: f32[16,72], index: 1, kind: input, shape index: {}]
  %s2 = inlined_call_operand.hbm [shape: f32[24,24], index: 2, kind: input, shape index: {}]
  %s3 = inlined_call_operand.vmem [shape: f32[1,24], index: 3, kind: input, shape index: {}]
  %s4 = inlined_call_operand.hbm [shape: f32[8,24], index: 4, kind: output, shape index: {}]
  %s5 = sld [smem:[#allocation0]]
  $region38: #{tpu_custom_call.1} parent=0
    _
  %s7 = ssub.s32 1, %s5
  %s8 = scalar_select 0, %s7, %s5
  $region1: #{tpu_custom_call.1} parent=0
    #allocation2 [shape = 'u8[4096]{0}', space=vmem, size = 0x1000, scoped, tag = 'input window, operand 0, single buffered']
    #allocation3 [shape = 's32[1]{0}', space=sflag, size = 0x4, scoped, tag = 'scoped memory for tpu_custom_call.1']
    #allocation4 [shape = 's32[1]{0}', space=sflag, size = 0x4, scoped, tag = 'scoped memory for tpu_custom_call.1']
    #allocation5 [shape = 'u8[8192]{0}', space=vmem, size = 0x2000, scoped, tag = 'input window, operand 1, single buffered']
    #allocation6 [shape = 's32[1]{0}', space=sflag, size = 0x4, scoped, tag = 'scoped memory for tpu_custom_call.1']
    #allocation7 [shape = 'u8[12288]{0}', space=vmem, size = 0x3000, scoped, tag = 'input window, operand 2, single buffered']
    #allocation8 [shape = 'u8[4096]{0}', space=vmem, size = 0x1000, scoped, tag = 'output window, operand 0, single buffered']
    %9 = vsyncpa [#allocation3], 0
    %10 = vsyncpa [#allocation6], 0
    %11 = vsyncpa [#allocation4], 0
    // Predicated region
    $region2: #{tpu_custom_call.1} parent=1 // pred_check
      _
    $region3: #{tpu_custom_call.1} parent=1 // pred_check_branch
      %13 = sbr.rel (0) target = $region5
    $region4: #{tpu_custom_call.1} parent=1 // pred_region
      %15 = vsyncadd [#allocation3], 0
      %s17 = sshll.u32 %s0, 4
      %s18 = int_to_ptr.hbm [resolvable:$true] %s17
      %s19 = sshll.u32 [#allocation2], 4
      %s20 = int_to_ptr.vmem [resolvable:$true] %s19
      %22 = dma.hbm_to_vmem [thread:$0]  %s18, 128, %s20, [#allocation3]
    $region5: #{tpu_custom_call.1} parent=1 // pred_fallthru
      _
    // Predicated region
    $region6: #{tpu_custom_call.1} parent=1 // pred_check
      _
    $region7: #{tpu_custom_call.1} parent=1 // pred_check_branch
      %24 = sbr.rel (0) target = $region9
    $region8: #{tpu_custom_call.1} parent=1 // pred_region
      %26 = vsyncadd [#allocation6], 0
      %s27 = sshll.u32 %s1, 4
      %s28 = int_to_ptr.hbm [resolvable:$true] %s27
      %s29 = sshll.u32 [#allocation5], 4
      %s30 = int_to_ptr.vmem [resolvable:$true] %s29
      %35 = dma.hbm_to_vmem [thread:$0]  %s28, 256, %s30, [#allocation6], 128, 128, 8
    $region9: #{tpu_custom_call.1} parent=1 // pred_fallthru
      _
    // Predicated region
    $region10: #{tpu_custom_call.1} parent=1 // pred_check
      _
    $region11: #{tpu_custom_call.1} parent=1 // pred_check_branch
      %37 = sbr.rel (0) target = $region13
    $region12: #{tpu_custom_call.1} parent=1 // pred_region
      %39 = vsyncadd [#allocation6], 0
      %s40 = sshll.u32 %s2, 4
      %s41 = int_to_ptr.hbm [resolvable:$true] %s40
      %s42 = sshll.u32 [#allocation7], 4
      %s43 = int_to_ptr.vmem [resolvable:$true] %s42
      %48 = dma.hbm_to_vmem [thread:$0]  %s41, 384, %s43, [#allocation6], 128, 128, 8
    $region13: #{tpu_custom_call.1} parent=1 // pred_fallthru
      _
    // Predicated region
    $region14: #{tpu_custom_call.1} parent=1 // pred_check
      _
    $region15: #{tpu_custom_call.1} parent=1 // pred_check_branch
      %50 = sbr.rel (0) target = $region17
    $region16: #{tpu_custom_call.1} parent=1 // pred_region
      _
    $region17: #{tpu_custom_call.1} parent=1 // pred_fallthru
      _
    // Predicated region
    $region18: #{tpu_custom_call.1} parent=1 // pred_check
      _
    $region19: #{tpu_custom_call.1} parent=1 // pred_check_branch
      %52 = sbr.rel (0) target = $region21
    $region20: #{tpu_custom_call.1} parent=1 // pred_region
      %54 = dma.done [#allocation3], 128
    $region21: #{tpu_custom_call.1} parent=1 // pred_fallthru
      _
    // Predicated region
    $region22: #{tpu_custom_call.1} parent=1 // pred_check
      _
    $region23: #{tpu_custom_call.1} parent=1 // pred_check_branch
      %56 = sbr.rel (0) target = $region25
    $region24: #{tpu_custom_call.1} parent=1 // pred_region
      %58 = dma.done [#allocation6], 256
    $region25: #{tpu_custom_call.1} parent=1 // pred_fallthru
      _
    // Predicated region
    $region26: #{tpu_custom_call.1} parent=1 // pred_check
      _
    $region27: #{tpu_custom_call.1} parent=1 // pred_check_branch
      %60 = sbr.rel (0) target = $region29
    $region28: #{tpu_custom_call.1} parent=1 // pred_region
      %62 = dma.done [#allocation6], 384
    $region29: #{tpu_custom_call.1} parent=1 // pred_fallthru
      _
    %v63 = vld [vmem:[#allocation2] sm:$0xff]
    %v64 = vld [vmem:[#allocation5] sm:$0xff]
    %v65 = vld [vmem:[#allocation5 + $0x8] sm:$0xff]
    %vm66 = vcmask 130048
    %v68 = vsel %vm66, %v63, 0
    %70 = vmatpush.msra.mxu0 0.0
    %71 = vmatpush.msra.mxu0 0.0
    %72 = vmatpush.msra.mxu0 0.0
    %73 = vmatpush.msra.mxu0 0.0
    %74 = vmatpush.msra.mxu0 0.0
    %75 = vmatpush.msra.mxu0 0.0
    %76 = vmatpush.msra.mxu0 0.0
    %77 = vmatpush.msra.mxu0 0.0
    %78 = vmatpush.msra.mxu0 0.0
    %79 = vmatpush.msra.mxu0 0.0
    %80 = vmatpush.msra.mxu0 0.0
    %81 = vmatpush.msra.mxu0 0.0
    %82 = vmatpush.msra.mxu0 0.0
    %83 = vmatpush.msra.mxu0 0.0
    %84 = vmatpush.msra.mxu0 %v65
    %85 = vmatpush.msra.mxu0 %v64
    %86 = vmatmul.f32.gmra.mxu0 %v68
    %v87 = vpop.f32.mrf.mxu0
    %v88 = vadd.f32 0.0, %v87
    %89 = vdwg.mxu0
    %v90 = vlaneseq
    %v91 = vshrl.u32 %v90, 7
    %v92 = vlaneseq
    %v93 = vand.u32 %v92, 127
    %vm94 = vcmp.gt.s32.totalorder %v93, %v91
    %96 = vrot.lane.b32.xlu0 %v88, 104
    %v97 = vpop.permute.xlu0 %96
    %vm98 = vcmask 64512
    %v99 = vsel %vm98, %v88, 0
    %v101 = vsel %vm98, %v97, 0
    %103 = vmatpush.xpose.msra.mxu0 0.0
    %104 = vmatpush.xpose.msra.mxu0 0.0
    %105 = vmatpush.xpose.msra.mxu0 0.0
    %106 = vmatpush.xpose.msra.mxu0 0.0
    %107 = vmatpush.xpose.msra.mxu0 0.0
    %108 = vmatpush.xpose.msra.mxu0 0.0
    %109 = vmatpush.xpose.msra.mxu0 0.0
    %110 = vmatpush.xpose.msra.mxu0 0.0
    %111 = vmatpush.xpose.msra.mxu0 0.0
    %112 = vmatpush.xpose.msra.mxu0 0.0
    %113 = vmatpush.xpose.msra.mxu0 0.0
    %114 = vmatpush.xpose.msra.mxu0 0.0
    %115 = vmatpush.xpose.msra.mxu0 0.0
    %116 = vmatpush.xpose.msra.mxu0 0.0
    %117 = vmatpush.xpose.msra.mxu0 0.0
    %118 = vmatpush.xpose.msra.mxu0 %v101
    %119 = vmatmul.f32.gmra.mxu0 %v99
    %v120 = vpop.f32.mrf.mxu0
    %v121 = vadd.f32 0.0, %v120
    %122 = vdwg.mxu0
    %v123 = vsel %vm94, -1e+30, %v121
    %v124 = vsel %vm98, %v123, -inf
    %125 = vmax.xlane.f32.xlu0 %v124
    %v126 = vpop.xlane.xlu0 %125
    %v127 = vsub.f32 %v123, %v126
    %v128 = vmul.f32 %v127, 1.442695
    %v129 = vpow.pop %v128
    %v130 = vsel %vm98, %v129, 0.0
    %131 = vadd.xlane.f32.xlu0 %v130
    %v132 = vpop.xlane.xlu0 %131
    %v133 = vrcp.pop %v132
    %v134 = vmul.f32 %v129, %v133
    %135 = vrot.lane.b32.xlu0 %v88, 80
    %v136 = vpop.permute.xlu0 %135
    %v139 = vsel %vm98, %v134, 0
    %141 = vmatpush.msra.mxu0 0.0
    %142 = vmatpush.msra.mxu0 0.0
    %143 = vmatpush.msra.mxu0 0.0
    %144 = vmatpush.msra.mxu0 0.0
    %145 = vmatpush.msra.mxu0 0.0
    %146 = vmatpush.msra.mxu0 0.0
    %147 = vmatpush.msra.mxu0 0.0
    %148 = vmatpush.msra.mxu0 0.0
    %149 = vmatpush.msra.mxu0 0.0
    %150 = vmatpush.msra.mxu0 0.0
    %151 = vmatpush.msra.mxu0 0.0
    %152 = vmatpush.msra.mxu0 0.0
    %153 = vmatpush.msra.mxu0 0.0
    %154 = vmatpush.msra.mxu0 0.0
    %155 = vmatpush.msra.mxu0 0.0
    %156 = vmatpush.msra.mxu0 %v136
    %157 = vmatmul.f32.gmra.mxu0 %v139
    %v158 = vpop.f32.mrf.mxu0
    %v159 = vadd.f32 0.0, %v158
    %160 = vdwg.mxu0
    %161 = vrot.lane.b32.xlu0 %v88, 120
    %v162 = vpop.permute.xlu0 %161
    %163 = vrot.lane.b32.xlu0 %v88, 96
    %v164 = vpop.permute.xlu0 %163
    %v165 = vsel %vm98, %v162, 0
    %v167 = vsel %vm98, %v164, 0
    %169 = vmatpush.xpose.msra.mxu0 0.0
    %170 = vmatpush.xpose.msra.mxu0 0.0
    %171 = vmatpush.xpose.msra.mxu0 0.0
    %172 = vmatpush.xpose.msra.mxu0 0.0
    %173 = vmatpush.xpose.msra.mxu0 0.0
    %174 = vmatpush.xpose.msra.mxu0 0.0
    %175 = vmatpush.xpose.msra.mxu0 0.0
    %176 = vmatpush.xpose.msra.mxu0 0.0
    %177 = vmatpush.xpose.msra.mxu0 0.0
    %178 = vmatpush.xpose.msra.mxu0 0.0
    %179 = vmatpush.xpose.msra.mxu0 0.0
    %180 = vmatpush.xpose.msra.mxu0 0.0
    %181 = vmatpush.xpose.msra.mxu0 0.0
    %182 = vmatpush.xpose.msra.mxu0 0.0
    %183 = vmatpush.xpose.msra.mxu0 0.0
    %184 = vmatpush.xpose.msra.mxu0 %v167
    %185 = vmatmul.f32.gmra.mxu0 %v165
    %v186 = vpop.f32.mrf.mxu0
    %v187 = vadd.f32 0.0, %v186
    %188 = vdwg.mxu0
    %v189 = vsel %vm94, -1e+30, %v187
    %v190 = vsel %vm98, %v189, -inf
    %191 = vmax.xlane.f32.xlu0 %v190
    %v192 = vpop.xlane.xlu0 %191
    %v193 = vsub.f32 %v189, %v192
    %v194 = vmul.f32 %v193, 1.442695
    %v195 = vpow.pop %v194
    %v196 = vsel %vm98, %v195, 0.0
    %197 = vadd.xlane.f32.xlu0 %v196
    %v198 = vpop.xlane.xlu0 %197
    %v199 = vrcp.pop %v198
    %v200 = vmul.f32 %v195, %v199
    %201 = vrot.lane.b32.xlu0 %v88, 72
    %v202 = vpop.permute.xlu0 %201
    %v205 = vsel %vm98, %v200, 0
    %207 = vmatpush.msra.mxu0 0.0
    %208 = vmatpush.msra.mxu0 0.0
    %209 = vmatpush.msra.mxu0 0.0
    %210 = vmatpush.msra.mxu0 0.0
    %211 = vmatpush.msra.mxu0 0.0
    %212 = vmatpush.msra.mxu0 0.0
    %213 = vmatpush.msra.mxu0 0.0
    %214 = vmatpush.msra.mxu0 0.0
    %215 = vmatpush.msra.mxu0 0.0
    %216 = vmatpush.msra.mxu0 0.0
    %217 = vmatpush.msra.mxu0 0.0
    %218 = vmatpush.msra.mxu0 0.0
    %219 = vmatpush.msra.mxu0 0.0
    %220 = vmatpush.msra.mxu0 0.0
    %221 = vmatpush.msra.mxu0 0.0
    %222 = vmatpush.msra.mxu0 %v202
    %223 = vmatmul.f32.gmra.mxu0 %v205
    %v224 = vpop.f32.mrf.mxu0
    %v225 = vadd.f32 0.0, %v224
    %226 = vdwg.mxu0
    %227 = vrot.lane.b32.xlu0 %v88, 112
    %v228 = vpop.permute.xlu0 %227
    %229 = vrot.lane.b32.xlu0 %v88, 88
    %v230 = vpop.permute.xlu0 %229
    %v231 = vsel %vm98, %v228, 0
    %v233 = vsel %vm98, %v230, 0
    %235 = vmatpush.xpose.msra.mxu0 0.0
    %236 = vmatpush.xpose.msra.mxu0 0.0
    %237 = vmatpush.xpose.msra.mxu0 0.0
    %238 = vmatpush.xpose.msra.mxu0 0.0
    %239 = vmatpush.xpose.msra.mxu0 0.0
    %240 = vmatpush.xpose.msra.mxu0 0.0
    %241 = vmatpush.xpose.msra.mxu0 0.0
    %242 = vmatpush.xpose.msra.mxu0 0.0
    %243 = vmatpush.xpose.msra.mxu0 0.0
    %244 = vmatpush.xpose.msra.mxu0 0.0
    %245 = vmatpush.xpose.msra.mxu0 0.0
    %246 = vmatpush.xpose.msra.mxu0 0.0
    %247 = vmatpush.xpose.msra.mxu0 0.0
    %248 = vmatpush.xpose.msra.mxu0 0.0
    %249 = vmatpush.xpose.msra.mxu0 0.0
    %250 = vmatpush.xpose.msra.mxu0 %v233
    %251 = vmatmul.f32.gmra.mxu0 %v231
    %v252 = vpop.f32.mrf.mxu0
    %v253 = vadd.f32 0.0, %v252
    %254 = vdwg.mxu0
    %v255 = vsel %vm94, -1e+30, %v253
    %v256 = vsel %vm98, %v255, -inf
    %257 = vmax.xlane.f32.xlu0 %v256
    %v258 = vpop.xlane.xlu0 %257
    %v259 = vsub.f32 %v255, %v258
    %v260 = vmul.f32 %v259, 1.442695
    %v261 = vpow.pop %v260
    %v262 = vsel %vm98, %v261, 0.0
    %263 = vadd.xlane.f32.xlu0 %v262
    %v264 = vpop.xlane.xlu0 %263
    %v265 = vrcp.pop %v264
    %v266 = vmul.f32 %v261, %v265
    %267 = vrot.lane.b32.xlu0 %v88, 64
    %v268 = vpop.permute.xlu0 %267
    %v271 = vsel %vm98, %v266, 0
    %273 = vmatpush.msra.mxu0 0.0
    %274 = vmatpush.msra.mxu0 0.0
    %275 = vmatpush.msra.mxu0 0.0
    %276 = vmatpush.msra.mxu0 0.0
    %277 = vmatpush.msra.mxu0 0.0
    %278 = vmatpush.msra.mxu0 0.0
    %279 = vmatpush.msra.mxu0 0.0
    %280 = vmatpush.msra.mxu0 0.0
    %281 = vmatpush.msra.mxu0 0.0
    %282 = vmatpush.msra.mxu0 0.0
    %283 = vmatpush.msra.mxu0 0.0
    %284 = vmatpush.msra.mxu0 0.0
    %285 = vmatpush.msra.mxu0 0.0
    %286 = vmatpush.msra.mxu0 0.0
    %287 = vmatpush.msra.mxu0 0.0
    %288 = vmatpush.msra.mxu0 %v268
    %289 = vmatmul.f32.gmra.mxu0 %v271
    %v290 = vpop.f32.mrf.mxu0
    %v291 = vadd.f32 0.0, %v290
    %292 = vdwg.mxu0
    %294 = vrot.lane.b32.xlu0 %v225, 8
    %v295 = vpop.permute.xlu0 %294
    %298 = vrot.lane.b32.xlu0 %v291, 16
    %v299 = vpop.permute.xlu0 %298
    %v301 = vsel %vm98, %v159, %v295
    %v302 = vsel %vm66, %v301, %v299
    %v303 = vld [vmem:[#allocation7] sm:$0xff]
    %v304 = vld [vmem:[#allocation7 + $0x8] sm:$0xff]
    %v305 = vld [vmem:[#allocation7 + $0x10] sm:$0xff]
    %v306 = vld [vmem:[%s3] sm:$0x1]
    %v308 = vperm.slane %v306, 0
    %vm310 = vcmask 195584
    %v312 = vsel %vm310, %v302, 0
    %314 = vmatpush.msra.mxu0 0.0
    %315 = vmatpush.msra.mxu0 0.0
    %316 = vmatpush.msra.mxu0 0.0
    %317 = vmatpush.msra.mxu0 0.0
    %318 = vmatpush.msra.mxu0 0.0
    %319 = vmatpush.msra.mxu0 0.0
    %320 = vmatpush.msra.mxu0 0.0
    %321 = vmatpush.msra.mxu0 0.0
    %322 = vmatpush.msra.mxu0 0.0
    %323 = vmatpush.msra.mxu0 0.0
    %324 = vmatpush.msra.mxu0 0.0
    %325 = vmatpush.msra.mxu0 0.0
    %326 = vmatpush.msra.mxu0 0.0
    %327 = vmatpush.msra.mxu0 %v305
    %328 = vmatpush.msra.mxu0 %v304
    %329 = vmatpush.msra.mxu0 %v303
    %330 = vmatmul.f32.gmra.mxu0 %v312
    %v331 = vpop.f32.mrf.mxu0
    %v332 = vadd.f32 %v308, %v331
    %333 = vdwg.mxu0
    %334 = vst.msk [vmem:[#allocation8] sm:$0xff] %vm310, %v332
    // Predicated region
    $region30: #{tpu_custom_call.1} parent=1 // pred_check
      _
    $region31: #{tpu_custom_call.1} parent=1 // pred_check_branch
      %336 = sbr.rel (0) target = $region33
    $region32: #{tpu_custom_call.1} parent=1 // pred_region
      %338 = vsyncadd [#allocation4], 0
      %s340 = sshll.u32 [#allocation8], 4
      %s341 = int_to_ptr.vmem [resolvable:$true] %s340
      %s342 = sshll.u32 %s4, 4
      %s343 = int_to_ptr.hbm [resolvable:$true] %s342
      %345 = dma.vmem_to_hbm [thread:$0]  %s341, 128, %s343, [#allocation4]
    $region33: #{tpu_custom_call.1} parent=1 // pred_fallthru
      _
    // Predicated region
    $region34: #{tpu_custom_call.1} parent=1 // pred_check
      _
    $region35: #{tpu_custom_call.1} parent=1 // pred_check_branch
      %347 = sbr.rel (0) target = $region37
    $region36: #{tpu_custom_call.1} parent=1 // pred_region
      %349 = dma.done [#allocation4], 128
    $region37: #{tpu_custom_call.1} parent=1 // pred_fallthru
      _
    %350 = vsyncpa [#allocation3], 1
    %351 = vsyncpa [#allocation6], 1
    %352 = vsyncpa [#allocation4], 1

</llo_original>
